<compile_context>
chip_gen: v6e
topology: v6e:2x2x1
jax: 0.10.0
libtpu: 0.0.40
codegen_flags: <defaults>
</compile_context>

<pallas_src>
import jax
import jax.numpy as jnp
import numpy as np
from jax.experimental import pallas as pl
from jax.experimental.pallas import tpu as pltpu


# ---------------------------------------------------------------------------
# Shared masked-softmax epilogue (traced inline inside the kernels).
#   logits (1, N) f32, batch_ids (1, N) i32  ->  (B, N) f32
# -1e30 sentinel (not -inf): a graph with zero nodes yields a uniform row
# instead of the reference's NaN row (only differs in that degenerate case).
# Batch ids outside [0, n_batch) contribute to no row.
# ---------------------------------------------------------------------------
def _masked_softmax(logits, batch_ids, out_shape):
    B, N = out_shape
    gids = jax.lax.broadcasted_iota(jnp.int32, (B, N), 0)       # graph id per row
    mask = batch_ids == gids                                     # (1,N)==(B,N) -> (B,N)
    masked = jnp.where(mask, logits, -1e30)
    m = jnp.max(masked, axis=1, keepdims=True)                   # lane reduce (B,1)
    e = jnp.exp(masked - m)
    return e / jnp.sum(e, axis=1, keepdims=True)


# ---------------------------------------------------------------------------
# Fused kernel (small/medium N): K-tiled GCN logits + masked softmax.
#   grid = (N // tk,)  ["arbitrary" -- contraction axis]
#   acc[0, j] += sum_k zv[k] * A^T[k, j]        (f32, VMEM-resident)
#   last step:  out = softmax_over_graph(dinv * acc)
# ---------------------------------------------------------------------------
def fused_gcn_attn_kernel(zv_ref, adjT_ref, dinv_ref, batch_ref, out_ref, acc_ref):
    k = pl.program_id(0)

    @pl.when(k == 0)
    def _():
        acc_ref[...] = jnp.zeros_like(acc_ref)

    # int8 {0,1,2} -> exact f32 upcast, bounded to this (tk, N) chunk only.
    a_t = adjT_ref[...].astype(jnp.float32)                      # (tk, N)
    acc_ref[...] += jnp.dot(zv_ref[...], a_t,
                            preferred_element_type=jnp.float32)   # (1, N)

    @pl.when(k == pl.num_programs(0) - 1)
    def _():
        logits = dinv_ref[...] * acc_ref[...]                     # (1, N)
        out_ref[...] = _masked_softmax(logits, batch_ref[...], out_ref.shape)


# ---------------------------------------------------------------------------
# Large-N path, kernel 1: per-node GCN logits, tiled over node columns (lane,
# "parallel") and contraction rows (K, "arbitrary"); lane-dense (1, tn) output.
# ---------------------------------------------------------------------------
def gcn_logits_kernel(zv_ref, adjT_ref, dinv_ref, out_ref, acc_ref):
    k = pl.program_id(1)

    @pl.when(k == 0)
    def _():
        acc_ref[...] = jnp.zeros_like(acc_ref)

    a_t = adjT_ref[...].astype(jnp.float32)                      # (tk, tn) chunk
    acc_ref[...] += jnp.dot(zv_ref[...], a_t,
                            preferred_element_type=jnp.float32)   # (1, tn)

    @pl.when(k == pl.num_programs(1) - 1)
    def _():
        out_ref[...] = dinv_ref[...] * acc_ref[...]               # lane-dense store


# ---------------------------------------------------------------------------
# Large-N path, kernel 2: batchwise masked softmax, output (B, N) lane-dense.
# ---------------------------------------------------------------------------
def masked_softmax_kernel(logits_ref, batch_ref, out_ref):
    out_ref[...] = _masked_softmax(logits_ref[...], batch_ref[...], out_ref.shape)


def _pick_tile(n, tile):
    """Largest valid tile: `tile` if it divides n and is 128-aligned (which also
    satisfies int8's 32-sublane packing), else the full dimension."""
    if tile < n and n % tile == 0 and tile % 128 == 0:
        return tile
    return n


def graph_conv_attention(nodes, edge_index, batch, n_batch, W1, b1, W2, b2,
                         *, tile_n=512, tile_k=512, fuse=None):
    """nodes (N,d_v) f32, edge_index (2,E) i32, batch (N,) i32 -> (n_batch, N)."""
    N, d_v = nodes.shape

    # TODO(synk): dense adjacency from edge_index is a data-dependent scatter
    # left to XLA; for large sparse graphs an edge-streaming formulation
    # (segment_sum of zv over incoming edges with scalar-prefetched indices)
    # would avoid the O(N^2) materialization entirely.
    # Build A^T directly in int8 (A[src,dst]=1 => A^T[dst,src]=1); self loops
    # via a diagonal scatter-add (A[i,i] becomes 2 if (i,i) was an edge,
    # matching `adjacency + eye`).  {0,1,2} is exact in int8.
    adjT = jnp.zeros((N, N), jnp.int8).at[edge_index[1], edge_index[0]].set(1)
    diag = jnp.arange(N, dtype=jnp.int32)
    adjT = adjT.at[diag, diag].add(1)

    # in-degree of A = column sums of A = row sums of A^T; self loops => deg>=1
    # (so the reference's inf->0 masked_fill can never trigger).  Reads int8.
    deg = jnp.sum(adjT, axis=1, dtype=jnp.float32)               # (N,)
    dinv = deg ** -0.5
    dinv_row = dinv.reshape(1, N).astype(jnp.float32)

    # Fold both Identity-activated linears and hoist zv out of the kernel:
    #   zv[k] = dinv[k] * ((W2 @ W1) . x[k]),  logits[j] = dinv[j] * (zv @ A^T)[j]
    # The constant (W2 @ b1 + b2) is dropped: softmax is shift-invariant.
    w_eff = (W2 @ W1).reshape(d_v).astype(jnp.float32)            # (d_v,)
    zv_row = (dinv * (nodes.astype(jnp.float32) @ w_eff)).reshape(1, N)

    batch_row = batch.astype(jnp.int32).reshape(1, N)

    if fuse is None:
        fuse = N <= 2048        # one fused launch when launch overhead dominates

    # 32 MiB scoped VMEM is safe on every generation (v5e default is only
    # 16 MiB; v7x has 64 MiB physical).  On v5e/v6e with very large N raise it
    # toward 64-96 MiB together with tile_n/tile_k >= 512; do NOT carry that
    # to v7x.
    vmem_limit = 32 * 1024 * 1024

    if fuse:
        tk = _pick_tile(N, tile_k)
        return pl.pallas_call(
            fused_gcn_attn_kernel,
            out_shape=jax.ShapeDtypeStruct((n_batch, N), jnp.float32),
            grid_spec=pltpu.PrefetchScalarGridSpec(
                num_scalar_prefetch=0,
                grid=(N // tk,),
                in_specs=[
                    pl.BlockSpec((1, tk), lambda k: (0, k)),       # zv K-slice
                    pl.BlockSpec((tk, N), lambda k: (k, 0)),       # A^T int8 K-tile
                    pl.BlockSpec((1, N), lambda k: (0, 0)),        # dinv (finalize)
                    pl.BlockSpec((1, N), lambda k: (0, 0)),        # batch ids
                ],
                out_specs=pl.BlockSpec((n_batch, N), lambda k: (0, 0)),
                scratch_shapes=[pltpu.VMEM((1, N), jnp.float32)],  # logits acc
            ),
            compiler_params=pltpu.CompilerParams(
                dimension_semantics=("arbitrary",),                # reduction axis
                vmem_limit_bytes=vmem_limit),
        )(zv_row, adjT, dinv_row, batch_row)

    # ---- large-N path: tiled logits kernel + tiny masked-softmax kernel ----
    tn = _pick_tile(N, tile_n)
    tk = _pick_tile(N, tile_k)

    logits = pl.pallas_call(
        gcn_logits_kernel,
        out_shape=jax.ShapeDtypeStruct((1, N), jnp.float32),
        grid_spec=pltpu.PrefetchScalarGridSpec(
            num_scalar_prefetch=0,
            grid=(N // tn, N // tk),
            in_specs=[
                pl.BlockSpec((1, tk), lambda j, k: (0, k)),        # zv K-slice
                pl.BlockSpec((tk, tn), lambda j, k: (k, j)),       # A^T int8 tile
                pl.BlockSpec((1, tn), lambda j, k: (0, j)),        # dinv lane tile
            ],
            out_specs=pl.BlockSpec((1, tn), lambda j, k: (0, j)),  # lane-dense logits
            scratch_shapes=[pltpu.VMEM((1, tn), jnp.float32)],
        ),
        compiler_params=pltpu.CompilerParams(
            dimension_semantics=("parallel", "arbitrary"),          # shard N tiles
            vmem_limit_bytes=vmem_limit),
    )(zv_row, adjT, dinv_row)

    attn = pl.pallas_call(
        masked_softmax_kernel,
        out_shape=jax.ShapeDtypeStruct((n_batch, N), jnp.float32),
        grid_spec=pltpu.PrefetchScalarGridSpec(
            num_scalar_prefetch=0,
            grid=(1,),
            in_specs=[
                pl.BlockSpec((1, N), lambda i: (0, 0)),            # logits
                pl.BlockSpec((1, N), lambda i: (0, 0)),            # batch ids
            ],
            out_specs=pl.BlockSpec((n_batch, N), lambda i: (0, 0)),
        ),
        compiler_params=pltpu.CompilerParams(
            dimension_semantics=("arbitrary",)),
    )(logits, batch_row)

    return attn                                                    # (N_batch, N_nodes)


def reference(nodes, edge_index, batch, n_batch, W1, b1, W2, b2):
    N, _ = nodes.shape
    A = jnp.zeros((N, N), jnp.float32).at[edge_index[0], edge_index[1]].set(1.0)
    A = A + jnp.eye(N, dtype=jnp.float32)
    d = jnp.sum(A, axis=0) ** -0.5
    D = jnp.diag(d)
    h = D @ A @ D @ nodes
    h = h @ W1.T + b1
    pre = (h @ W2.T + b2).T                                        # (1, N)
    M = batch[None, :] == jnp.arange(n_batch)[:, None]             # (B, N)
    masked = jnp.where(M, pre, -jnp.inf)
    return jax.nn.softmax(masked, axis=1)


if __name__ == "__main__":
    N_nodes, d_v, N_batch = 256, 32, 4
    per = N_nodes // N_batch                                       # 64 nodes per graph

    key = jax.random.PRNGKey(0)
    k_nodes, k_w1, k_b1, k_w2, k_b2 = jax.random.split(key, 5)

    nodes = jax.random.normal(k_nodes, (N_nodes, d_v), dtype=jnp.float32)

    # N_batch ring graphs (both directions), 'per' nodes each.
    node_ids = jnp.arange(N_nodes, dtype=jnp.int32)
    graph_of = node_ids // per
    nxt = (node_ids % per + 1) % per + graph_of * per
    src = jnp.concatenate([node_ids, nxt])
    dst = jnp.concatenate([nxt, node_ids])
    edge_index = jnp.stack([src, dst]).astype(jnp.int32)           # (2, 2*N_nodes)
    batch = graph_of.astype(jnp.int32)                             # (N_nodes,)

    # Deterministic parameter init (Linear: W (out, in), bias (out,))
    W1 = 0.1 * jax.random.normal(k_w1, (d_v, d_v), dtype=jnp.float32)
    b1 = 0.1 * jax.random.normal(k_b1, (d_v,), dtype=jnp.float32)
    W2 = 0.1 * jax.random.normal(k_w2, (1, d_v), dtype=jnp.float32)
    b2 = 0.1 * jax.random.normal(k_b2, (1,), dtype=jnp.float32)

    ref = reference(nodes, edge_index, batch, N_batch, W1, b1, W2, b2)

    # Default small-N path: single fused kernel, one grid step.
    attn = graph_conv_attention(nodes, edge_index, batch, N_batch,
                                W1, b1, W2, b2)
    attn = jax.block_until_ready(attn)
    assert attn.shape == (N_batch, N_nodes)
    np.testing.assert_allclose(np.asarray(attn), np.asarray(ref),
                               rtol=1e-5, atol=1e-5)

    # Also exercise the large-N tiled path (2x2 grid of 128-tiles here).
    attn_tiled = graph_conv_attention(nodes, edge_index, batch, N_batch,
                                      W1, b1, W2, b2,
                                      tile_n=128, tile_k=128, fuse=False)
    attn_tiled = jax.block_until_ready(attn_tiled)
    np.testing.assert_allclose(np.asarray(attn_tiled), np.asarray(ref),
                               rtol=1e-5, atol=1e-5)

    print("KERNEL_OK")
</pallas_src>

<mosaic_0001>
module attributes {stable_mosaic.version = 11 : i64} {
  func.func @fused_gcn_attn_kernel(%arg0: i32, %arg1: memref<1x256xf32, #tpu.memory_space<vmem>>, %arg2: memref<256x256xi8, #tpu.memory_space<vmem>>, %arg3: memref<1x256xf32, #tpu.memory_space<vmem>>, %arg4: memref<1x256xi32, #tpu.memory_space<vmem>>, %arg5: memref<4x256xf32, #tpu.memory_space<vmem>>, %arg6: memref<1x256xf32, #tpu.memory_space<vmem>>) attributes {dimension_semantics = [#tpu.dimension_semantics<arbitrary>], iteration_bounds = array<i64: 1>, scalar_prefetch = 0 : i64, scratch_operands = 1 : i64, tpu.core_type = #tpu.core_type<tc>, window_params = [{transform_indices = @transform_0, window_bounds = array<i64: 1, 256>}, {transform_indices = @transform_1, window_bounds = array<i64: 256, 256>}, {pipeline_mode = #tpu.pipeline_mode<synchronous>, transform_indices = @transform_2, window_bounds = array<i64: 1, 256>}, {pipeline_mode = #tpu.pipeline_mode<synchronous>, transform_indices = @transform_3, window_bounds = array<i64: 1, 256>}, {pipeline_mode = #tpu.pipeline_mode<synchronous>, transform_indices = @transform_4, window_bounds = array<i64: 4, 256>}]} {
    %c0_i32 = arith.constant 0 : i32
    %0 = arith.cmpi eq, %arg0, %c0_i32 : i32
    %1 = arith.extui %0 : i1 to i32
    %c0_i32_0 = arith.constant 0 : i32
    %2 = arith.cmpi ne, %1, %c0_i32_0 : i32
    scf.if %2 {
      %cst_10 = arith.constant 0.000000e+00 : f32
      %13 = vector.broadcast %cst_10 : f32 to vector<1x256xf32>
      %c0_11 = arith.constant 0 : index
      %c0_12 = arith.constant 0 : index
      %14 = vector.load %arg6[%c0_11, %c0_12] : memref<1x256xf32, #tpu.memory_space<vmem>>, vector<1x256xf32>
      tpu.vector_store %arg6[%c0_11, %c0_12], %13 {strides = array<i32>} : memref<1x256xf32, #tpu.memory_space<vmem>>, vector<1x256xf32>,
    } else {
    }
    %c0 = arith.constant 0 : index
    %c0_1 = arith.constant 0 : index
    %3 = vector.load %arg2[%c0, %c0_1] : memref<256x256xi8, #tpu.memory_space<vmem>>, vector<256x256xi8>
    %4 = arith.sitofp %3 : vector<256x256xi8> to vector<256x256xf32>
    %c0_2 = arith.constant 0 : index
    %c0_3 = arith.constant 0 : index
    %5 = vector.load %arg6[%c0_2, %c0_3] : memref<1x256xf32, #tpu.memory_space<vmem>>, vector<1x256xf32>
    %c0_4 = arith.constant 0 : index
    %c0_5 = arith.constant 0 : index
    %6 = vector.load %arg1[%c0_4, %c0_5] : memref<1x256xf32, #tpu.memory_space<vmem>>, vector<1x256xf32>
    %cst = arith.constant dense<0.000000e+00> : vector<1x256xf32>
    %7 = tpu.matmul %6, %4, %cst {dimension_numbers = #tpu.dot_dimension_numbers<[1], [0], [0], [1], [0, 0, 1, 1], [], []>} : vector<1x256xf32>, vector<256x256xf32>, vector<1x256xf32> -> vector<1x256xf32>
    %8 = arith.addf %5, %7 : vector<1x256xf32>
    %c0_6 = arith.constant 0 : index
    %c0_7 = arith.constant 0 : index
    %9 = vector.load %arg6[%c0_6, %c0_7] : memref<1x256xf32, #tpu.memory_space<vmem>>, vector<1x256xf32>
    tpu.vector_store %arg6[%c0_6, %c0_7], %8 {strides = array<i32>} : memref<1x256xf32, #tpu.memory_space<vmem>>, vector<1x256xf32>,
    %c0_i32_8 = arith.constant 0 : i32
    %10 = arith.cmpi eq, %arg0, %c0_i32_8 : i32
    %11 = arith.extui %10 : i1 to i32
    %c0_i32_9 = arith.constant 0 : i32
    %12 = arith.cmpi ne, %11, %c0_i32_9 : i32
    scf.if %12 {
      %c0_10 = arith.constant 0 : index
      %c0_11 = arith.constant 0 : index
      %13 = vector.load %arg3[%c0_10, %c0_11] : memref<1x256xf32, #tpu.memory_space<vmem>>, vector<1x256xf32>
      %c0_12 = arith.constant 0 : index
      %c0_13 = arith.constant 0 : index
      %14 = vector.load %arg6[%c0_12, %c0_13] : memref<1x256xf32, #tpu.memory_space<vmem>>, vector<1x256xf32>
      %15 = arith.mulf %13, %14 : vector<1x256xf32>
      %c0_14 = arith.constant 0 : index
      %c0_15 = arith.constant 0 : index
      %16 = vector.load %arg4[%c0_14, %c0_15] : memref<1x256xi32, #tpu.memory_space<vmem>>, vector<1x256xi32>
      %17 = tpu.iota {dimensions = array<i32: 0>} : vector<4x256xi32>
      %18 = vector.broadcast %16 : vector<1x256xi32> to vector<4x256xi32>
      %19 = arith.cmpi eq, %18, %17 : vector<4x256xi32>
      %cst_16 = arith.constant -1.000000e+30 : f32
      %20 = vector.shape_cast %15 : vector<1x256xf32> to vector<1x256xf32>
      %21 = vector.broadcast %20 : vector<1x256xf32> to vector<4x256xf32>
      %22 = vector.broadcast %cst_16 : f32 to vector<4x256xf32>
      %23 = arith.select %19, %21, %22 : vector<4x256xi1>, vector<4x256xf32>
      %cst_17 = arith.constant dense<0xFF800000> : vector<4xf32>
      %24 = vector.multi_reduction <maximumf>, %23, %cst_17 [1] : vector<4x256xf32> to vector<4xf32>
      %25 = vector.shape_cast %24 : vector<4xf32> to vector<4x1xf32>
      %26 = vector.broadcast %25 : vector<4x1xf32> to vector<4x256xf32>
      %27 = arith.subf %23, %26 : vector<4x256xf32>
      %28 = math.exp %27 : vector<4x256xf32>
      %cst_18 = arith.constant dense<0.000000e+00> : vector<4xf32>
      %29 = vector.multi_reduction <add>, %28, %cst_18 [1] : vector<4x256xf32> to vector<4xf32>
      %30 = vector.shape_cast %29 : vector<4xf32> to vector<4x1xf32>
      %31 = vector.broadcast %30 : vector<4x1xf32> to vector<4x256xf32>
      %32 = arith.divf %28, %31 : vector<4x256xf32>
      %c0_19 = arith.constant 0 : index
      %c0_20 = arith.constant 0 : index
      %33 = vector.load %arg5[%c0_19, %c0_20] : memref<4x256xf32, #tpu.memory_space<vmem>>, vector<4x256xf32>
      tpu.vector_store %arg5[%c0_19, %c0_20], %32 {strides = array<i32>} : memref<4x256xf32, #tpu.memory_space<vmem>>, vector<4x256xf32>,
    } else {
    }
    return
  }
  func.func @transform_0(%arg0: i32) -> (i32, i32) {
    %c0_i32 = arith.constant 0 : i32
    %c0_i32_0 = arith.constant 0 : i32
    return %c0_i32, %arg0 : i32, i32
  }
  func.func @transform_1(%arg0: i32) -> (i32, i32) {
    %c0_i32 = arith.constant 0 : i32
    %c0_i32_0 = arith.constant 0 : i32
    return %arg0, %c0_i32 : i32, i32
  }
  func.func @transform_2(%arg0: i32) -> (i32, i32) {
    %c0_i32 = arith.constant 0 : i32
    %c0_i32_0 = arith.constant 0 : i32
    %c0_i32_1 = arith.constant 0 : i32
    return %c0_i32, %c0_i32_0 : i32, i32
  }
  func.func @transform_3(%arg0: i32) -> (i32, i32) {
    %c0_i32 = arith.constant 0 : i32
    %c0_i32_0 = arith.constant 0 : i32
    %c0_i32_1 = arith.constant 0 : i32
    return %c0_i32, %c0_i32_0 : i32, i32
  }
  func.func @transform_4(%arg0: i32) -> (i32, i32) {
    %c0_i32 = arith.constant 0 : i32
    %c0_i32_0 = arith.constant 0 : i32
    %c0_i32_1 = arith.constant 0 : i32
    return %c0_i32, %c0_i32_0 : i32, i32
  }
}

</mosaic_0001>

<llo_original>
// kernel: tpu_custom_call.1
$region0: #{tpu_custom_call.1}
  #allocation0 [shape = 'u32[]', space=smem, size = 0x4, offset = 0x4, fixed_abs, tag = 'smem constant byte address 0x4 - core index']
  #allocation1 [shape = 'u32[144,128]{1,0:T(1,128)}', space=vmem, size = 0x12000, scoped, tag = 'internal scratch']
  #allocation2 [shape = 'f32[1,256]{1,0:T(1,128)}', space=vmem, size = 0x400, scoped, tag = 'scratch operand']
  %s0 = inlined_call_operand.hbm [shape: f32[1,256], index: 0, kind: input, shape index: {}]
  %s1 = inlined_call_operand.hbm [shape: s8[256,256], index: 1, kind: input, shape index: {}]
  %s2 = inlined_call_operand.vmem [shape: f32[1,256], index: 2, kind: input, shape index: {}]
  %s3 = inlined_call_operand.vmem [shape: s32[1,256], index: 3, kind: input, shape index: {}]
  %s4 = inlined_call_operand.hbm [shape: f32[4,256], index: 4, kind: output, shape index: {}]
  %s5 = sld [smem:[#allocation0]]
  $region42: #{tpu_custom_call.1} parent=0
    _
  %s7 = ssub.s32 1, %s5
  %s8 = scalar_select 0, %s7, %s5
  $region1: #{tpu_custom_call.1} parent=0
    #allocation3 [shape = 'u8[1024]{0}', space=vmem, size = 0x400, scoped, tag = 'input window, operand 0, single buffered']
    #allocation4 [shape = 's32[1]{0}', space=sflag, size = 0x4, scoped, tag = 'scoped memory for tpu_custom_call.1']
    #allocation5 [shape = 's32[1]{0}', space=sflag, size = 0x4, scoped, tag = 'scoped memory for tpu_custom_call.1']
    #allocation6 [shape = 'u8[65536]{0}', space=vmem, size = 0x10000, scoped, tag = 'input window, operand 1, single buffered']
    #allocation7 [shape = 's32[1]{0}', space=sflag, size = 0x4, scoped, tag = 'scoped memory for tpu_custom_call.1']
    #allocation8 [shape = 'u8[4096]{0}', space=vmem, size = 0x1000, scoped, tag = 'output window, operand 0, single buffered']
    %9 = vsyncpa [#allocation4], 0
    %10 = vsyncpa [#allocation7], 0
    %11 = vsyncpa [#allocation5], 0
    // Predicated region
    $region2: #{tpu_custom_call.1} parent=1 // pred_check
      _
    $region3: #{tpu_custom_call.1} parent=1 // pred_check_branch
      %13 = sbr.rel (0) target = $region5
    $region4: #{tpu_custom_call.1} parent=1 // pred_region
      %s15 = ssub.s32 32, 32
      %16 = vsyncadd [#allocation4], %s15
      %s18 = sshll.u32 [#allocation3], 4
      %s19 = int_to_ptr.vmem [resolvable:$true] %s18
      %21 = dma.hbm_to_vmem [thread:$0]  %s0, 32, %s19, [#allocation4]
    $region5: #{tpu_custom_call.1} parent=1 // pred_fallthru
      _
    // Predicated region
    $region6: #{tpu_custom_call.1} parent=1 // pred_check
      _
    $region7: #{tpu_custom_call.1} parent=1 // pred_check_branch
      %23 = sbr.rel (0) target = $region9
    $region8: #{tpu_custom_call.1} parent=1 // pred_region
      %s25 = ssub.s32 2048, 2048
      %26 = vsyncadd [#allocation7], %s25
      %s27 = sshll.u32 [#allocation6], 4
      %s28 = int_to_ptr.vmem [resolvable:$true] %s27
      %33 = dma.hbm_to_vmem [thread:$0]  %s1, 2048, %s28, [#allocation7], 256, 256, 16
    $region9: #{tpu_custom_call.1} parent=1 // pred_fallthru
      _
    // Predicated region
    $region10: #{tpu_custom_call.1} parent=1 // pred_check
      _
    $region11: #{tpu_custom_call.1} parent=1 // pred_check_branch
      %35 = sbr.rel (0) target = $region13
    $region12: #{tpu_custom_call.1} parent=1 // pred_region
      _
    $region13: #{tpu_custom_call.1} parent=1 // pred_fallthru
      _
    // Predicated region
    $region14: #{tpu_custom_call.1} parent=1 // pred_check
      _
    $region15: #{tpu_custom_call.1} parent=1 // pred_check_branch
      %37 = sbr.rel (0) target = $region17
    $region16: #{tpu_custom_call.1} parent=1 // pred_region
      _
    $region17: #{tpu_custom_call.1} parent=1 // pred_fallthru
      _
    // Predicated region
    $region18: #{tpu_custom_call.1} parent=1 // pred_check
      _
    $region19: #{tpu_custom_call.1} parent=1 // pred_check_branch
      %39 = sbr.rel (0) target = $region21
    $region20: #{tpu_custom_call.1} parent=1 // pred_region
      %40 = dma.done [#allocation4], 32
    $region21: #{tpu_custom_call.1} parent=1 // pred_fallthru
      _
    // Predicated region
    $region22: #{tpu_custom_call.1} parent=1 // pred_check
      _
    $region23: #{tpu_custom_call.1} parent=1 // pred_check_branch
      %42 = sbr.rel (0) target = $region25
    $region24: #{tpu_custom_call.1} parent=1 // pred_region
      %43 = dma.done [#allocation7], 2048
    $region25: #{tpu_custom_call.1} parent=1 // pred_fallthru
      _
    %p44 = scmp.eq.s32.totalorder 0, 0
    // Predicated region
    $region26: #{tpu_custom_call.1} parent=1 // pred_check
      %p45 = pneg %p44
    $region27: #{tpu_custom_call.1} parent=1 // pred_check_branch
      %47 = sbr.rel (%p45) target = $region29
    $region28: #{tpu_custom_call.1} parent=1 // pred_region
      %v48 = vlaneseq
      %vm49 = vcmp.ge.s32.totalorder %v48, 0
      %vm50 = vcmp.lt.s32.totalorder %v48, 256
      %vm51 = vmand %vm49, %vm50
      %52 = vst.msk [vmem:[#allocation2] sm:$0x3] %vm51, 0.0
    $region29: #{tpu_custom_call.1} parent=1 // pred_fallthru
      _
    %v53 = vld [vmem:[#allocation6] sm:$0xff]
    %v54 = vld [vmem:[#allocation6 + $0x8] sm:$0xff]
    %v55 = vld [vmem:[#allocation6 + $0x10] sm:$0xff]
    %v56 = vld [vmem:[#allocation6 + $0x18] sm:$0xff]
    %v57 = vld [vmem:[#allocation6 + $0x20] sm:$0xff]
    %v58 = vld [vmem:[#allocation6 + $0x28] sm:$0xff]
    %v59 = vld [vmem:[#allocation6 + $0x30] sm:$0xff]
    %v60 = vld [vmem:[#allocation6 + $0x38] sm:$0xff]
    %v61 = vld [vmem:[#allocation6 + $0x40] sm:$0xff]
    %v62 = vld [vmem:[#allocation6 + $0x48] sm:$0xff]
    %v63 = vld [vmem:[#allocation6 + $0x50] sm:$0xff]
    %v64 = vld [vmem:[#allocation6 + $0x58] sm:$0xff]
    %v65 = vld [vmem:[#allocation6 + $0x60] sm:$0xff]
    %v66 = vld [vmem:[#allocation6 + $0x68] sm:$0xff]
    %v67 = vld [vmem:[#allocation6 + $0x70] sm:$0xff]
    %v68 = vld [vmem:[#allocation6 + $0x78] sm:$0xff]
    %v69 = vunpack.c.0.s8 %v53
    %v70 = vunpack.c.0.s8 %v54
    %v71 = vunpack.c.1.s8 %v53
    %v72 = vunpack.c.1.s8 %v54
    %v73 = vunpack.c.2.s8 %v53
    %v74 = vunpack.c.2.s8 %v54
    %v75 = vunpack.c.3.s8 %v53
    %v76 = vunpack.c.3.s8 %v54
    %v77 = vunpack.c.0.s8 %v55
    %v78 = vunpack.c.0.s8 %v56
    %v79 = vunpack.c.1.s8 %v55
    %v80 = vunpack.c.1.s8 %v56
    %v81 = vunpack.c.2.s8 %v55
    %v82 = vunpack.c.2.s8 %v56
    %v83 = vunpack.c.3.s8 %v55
    %v84 = vunpack.c.3.s8 %v56
    %v85 = vunpack.c.0.s8 %v57
    %v86 = vunpack.c.0.s8 %v58
    %v87 = vunpack.c.1.s8 %v57
    %v88 = vunpack.c.1.s8 %v58
    %v89 = vunpack.c.2.s8 %v57
    %v90 = vunpack.c.2.s8 %v58
    %v91 = vunpack.c.3.s8 %v57
    %v92 = vunpack.c.3.s8 %v58
    %v93 = vunpack.c.0.s8 %v59
    %v94 = vunpack.c.0.s8 %v60
    %v95 = vunpack.c.1.s8 %v59
    %v96 = vunpack.c.1.s8 %v60
    %v97 = vunpack.c.2.s8 %v59
    %v98 = vunpack.c.2.s8 %v60
    %v99 = vunpack.c.3.s8 %v59
    %v100 = vunpack.c.3.s8 %v60
    %v101 = vunpack.c.0.s8 %v61
    %v102 = vunpack.c.0.s8 %v62
    %v103 = vunpack.c.1.s8 %v61
    %v104 = vunpack.c.1.s8 %v62
    %v105 = vunpack.c.2.s8 %v61
    %v106 = vunpack.c.2.s8 %v62
    %v107 = vunpack.c.3.s8 %v61
    %v108 = vunpack.c.3.s8 %v62
    %v109 = vunpack.c.0.s8 %v63
    %v110 = vunpack.c.0.s8 %v64
    %v111 = vunpack.c.1.s8 %v63
    %v112 = vunpack.c.1.s8 %v64
    %v113 = vunpack.c.2.s8 %v63
    %v114 = vunpack.c.2.s8 %v64
    %v115 = vunpack.c.3.s8 %v63
    %v116 = vunpack.c.3.s8 %v64
    %v117 = vunpack.c.0.s8 %v65
    %v118 = vunpack.c.0.s8 %v66
    %v119 = vunpack.c.1.s8 %v65
    %v120 = vunpack.c.1.s8 %v66
    %v121 = vunpack.c.2.s8 %v65
    %v122 = vunpack.c.2.s8 %v66
    %v123 = vunpack.c.3.s8 %v65
    %v124 = vunpack.c.3.s8 %v66
    %v125 = vunpack.c.0.s8 %v67
    %v126 = vunpack.c.0.s8 %v68
    %v127 = vunpack.c.1.s8 %v67
    %v128 = vunpack.c.1.s8 %v68
    %v129 = vunpack.c.2.s8 %v67
    %v130 = vunpack.c.2.s8 %v68
    %v131 = vunpack.c.3.s8 %v67
    %v132 = vunpack.c.3.s8 %v68
    %v133 = vcvt.s32.f32 %v69
    %v134 = vcvt.s32.f32 %v70
    %v135 = vcvt.s32.f32 %v71
    %v136 = vcvt.s32.f32 %v72
    %v137 = vcvt.s32.f32 %v73
    %v138 = vcvt.s32.f32 %v74
    %v139 = vcvt.s32.f32 %v75
    %v140 = vcvt.s32.f32 %v76
    %v141 = vcvt.s32.f32 %v77
    %v142 = vcvt.s32.f32 %v78
    %v143 = vcvt.s32.f32 %v79
    %v144 = vcvt.s32.f32 %v80
    %v145 = vcvt.s32.f32 %v81
    %v146 = vcvt.s32.f32 %v82
    %v147 = vcvt.s32.f32 %v83
    %v148 = vcvt.s32.f32 %v84
    %v149 = vcvt.s32.f32 %v85
    %v150 = vcvt.s32.f32 %v86
    %v151 = vcvt.s32.f32 %v87
    %v152 = vcvt.s32.f32 %v88
    %v153 = vcvt.s32.f32 %v89
    %v154 = vcvt.s32.f32 %v90
    %v155 = vcvt.s32.f32 %v91
    %v156 = vcvt.s32.f32 %v92
    %v157 = vcvt.s32.f32 %v93
    %v158 = vcvt.s32.f32 %v94
    %v159 = vcvt.s32.f32 %v95
    %v160 = vcvt.s32.f32 %v96
    %v161 = vcvt.s32.f32 %v97
    %v162 = vcvt.s32.f32 %v98
    %v163 = vcvt.s32.f32 %v99
    %v164 = vcvt.s32.f32 %v100
    %v165 = vcvt.s32.f32 %v101
    %v166 = vcvt.s32.f32 %v102
    %v167 = vcvt.s32.f32 %v103
    %v168 = vcvt.s32.f32 %v104
    %v169 = vcvt.s32.f32 %v105
    %v170 = vcvt.s32.f32 %v106
    %v171 = vcvt.s32.f32 %v107
    %v172 = vcvt.s32.f32 %v108
    %v173 = vcvt.s32.f32 %v109
    %v174 = vcvt.s32.f32 %v110
    %v175 = vcvt.s32.f32 %v111
    %v176 = vcvt.s32.f32 %v112
    %v177 = vcvt.s32.f32 %v113
    %v178 = vcvt.s32.f32 %v114
    %v179 = vcvt.s32.f32 %v115
    %v180 = vcvt.s32.f32 %v116
    %v181 = vcvt.s32.f32 %v117
    %v182 = vcvt.s32.f32 %v118
    %v183 = vcvt.s32.f32 %v119
    %v184 = vcvt.s32.f32 %v120
    %v185 = vcvt.s32.f32 %v121
    %v186 = vcvt.s32.f32 %v122
    %v187 = vcvt.s32.f32 %v123
    %v188 = vcvt.s32.f32 %v124
    %v189 = vcvt.s32.f32 %v125
    %v190 = vcvt.s32.f32 %v126
    %v191 = vcvt.s32.f32 %v127
    %v192 = vcvt.s32.f32 %v128
    %v193 = vcvt.s32.f32 %v129
    %v194 = vcvt.s32.f32 %v130
    %v195 = vcvt.s32.f32 %v131
    %v196 = vcvt.s32.f32 %v132
    %v197 = vld [vmem:[#allocation2] sm:$0x3]
    %v198 = vld [vmem:[#allocation3] sm:$0x3]
    %v200 = vlaneseq
    %v201 = vshrl.u32 %v200, 7
    %v202 = vsub.s32 0, %v201
    %v203 = vrot.slane %v198, %v202
    %v204 = vlaneseq
    %v205 = vshrl.u32 %v204, 7
    %v206 = vsub.s32 1, %v205
    %v207 = vrot.slane %v198, %v206
    %210 = vmatprep.subr.mxu0 %v164
    %211 = vmatpush1.msra.mxu0 %v163
    %212 = vmatprep.subr.mxu0 %v162
    %213 = vmatpush1.msra.mxu0 %v161
    %214 = vmatprep.subr.mxu0 %v160
    %215 = vmatpush1.msra.mxu0 %v159
    %216 = vmatprep.subr.mxu0 %v158
    %217 = vmatpush1.msra.mxu0 %v157
    %218 = vmatprep.subr.mxu0 %v156
    %219 = vmatpush1.msra.mxu0 %v155
    %220 = vmatprep.subr.mxu0 %v154
    %221 = vmatpush1.msra.mxu0 %v153
    %222 = vmatprep.subr.mxu0 %v152
    %223 = vmatpush1.msra.mxu0 %v151
    %224 = vmatprep.subr.mxu0 %v150
    %225 = vmatpush1.msra.mxu0 %v149
    %226 = vmatprep.subr.mxu0 %v148
    %227 = vmatpush1.msra.mxu0 %v147
    %228 = vmatprep.subr.mxu0 %v146
    %229 = vmatpush1.msra.mxu0 %v145
    %230 = vmatprep.subr.mxu0 %v144
    %231 = vmatpush1.msra.mxu0 %v143
    %232 = vmatprep.subr.mxu0 %v142
    %233 = vmatpush1.msra.mxu0 %v141
    %234 = vmatprep.subr.mxu0 %v140
    %235 = vmatpush1.msra.mxu0 %v139
    %236 = vmatprep.subr.mxu0 %v138
    %237 = vmatpush1.msra.mxu0 %v137
    %238 = vmatprep.subr.mxu0 %v136
    %239 = vmatpush1.msra.mxu0 %v135
    %240 = vmatprep.subr.mxu0 %v134
    %241 = vmatpush1.msra.mxu0 %v133
    %242 = vmatprep.subr.mxu0 %v196
    %243 = vmatpush2.msra.mxu0 %v195
    %244 = vmatprep.subr.mxu0 %v194
    %245 = vmatpush2.msra.mxu0 %v193
    %246 = vmatprep.subr.mxu0 %v192
    %247 = vmatpush2.msra.mxu0 %v191
    %248 = vmatprep.subr.mxu0 %v190
    %249 = vmatpush2.msra.mxu0 %v189
    %250 = vmatprep.subr.mxu0 %v188
    %251 = vmatpush2.msra.mxu0 %v187
    %252 = vmatprep.subr.mxu0 %v186
    %253 = vmatpush2.msra.mxu0 %v185
    %254 = vmatprep.subr.mxu0 %v184
    %255 = vmatpush2.msra.mxu0 %v183
    %256 = vmatprep.subr.mxu0 %v182
    %257 = vmatpush2.msra.mxu0 %v181
    %258 = vmatprep.subr.mxu0 %v180
    %259 = vmatpush2.msra.mxu0 %v179
    %260 = vmatprep.subr.mxu0 %v178
    %261 = vmatpush2.msra.mxu0 %v177
    %262 = vmatprep.subr.mxu0 %v176
    %263 = vmatpush2.msra.mxu0 %v175
    %264 = vmatprep.subr.mxu0 %v174
    %265 = vmatpush2.msra.mxu0 %v173
    %266 = vmatprep.subr.mxu0 %v172
    %267 = vmatpush2.msra.mxu0 %v171
    %268 = vmatprep.subr.mxu0 %v170
    %269 = vmatpush2.msra.mxu0 %v169
    %270 = vmatprep.subr.mxu0 %v168
    %271 = vmatpush2.msra.mxu0 %v167
    %272 = vmatprep.subr.mxu0 %v166
    %273 = vmatpush2.msra.mxu0 %v165
    %274 = vmatprep.mubr.f32.mxu0 %v207
    %275 = vmatmul.mubr.f32.gmra.mxu0 %v203
    %v276 = vpop.f32.mrf.mxu0
    %v277 = vadd.f32 0.0, %v276
    %v278 = vpop.f32.mrf.mxu0
    %v279 = vadd.f32 0.0, %v278
    %280 = vdwg.mxu0
    %v283 = vcombine.low %v277, %v279
    %v285 = vunpack.c.l.s4 1966171168
    %v286 = vunpack.c.0.s8 %v285
    %v287 = vlaneseq
    %v288 = vshrl.u32 %v287, 7
    %v289 = vsub.s32 %v286, %v288
    %v290 = vrot.slane %v283, %v289
    %v292 = vunpack.c.l.s4 1966171168
    %v293 = vunpack.c.0.s8 %v292
    %v294 = vlaneseq
    %v295 = vshrl.u32 %v294, 7
    %v296 = vsub.s32 %v293, %v295
    %v297 = vrot.slane %v290, %v296
    %v299 = vadd.f32 %v197, %v297
    %v300 = vlaneseq
    %vm301 = vcmp.ge.s32.totalorder %v300, 0
    %vm302 = vcmp.lt.s32.totalorder %v300, 256
    %vm303 = vmand %vm301, %vm302
    %304 = vst.msk [vmem:[#allocation2] sm:$0x3] %vm303, %v299
    // Predicated region
    $region30: #{tpu_custom_call.1} parent=1 // pred_check
      %p305 = pneg %p44
    $region31: #{tpu_custom_call.1} parent=1 // pred_check_branch
      %307 = sbr.rel (%p305) target = $region33
    $region32: #{tpu_custom_call.1} parent=1 // pred_region
      %v308 = vld [vmem:[%s2] sm:$0x3]
      %v309 = vld [vmem:[#allocation2] sm:$0x3]
      %v310 = vmul.f32 %v308, %v309
      %v311 = vld [vmem:[%s3] sm:$0x3]
      %v312 = vlaneseq
      %v313 = vshrl.u32 %v312, 7
      %v314 = vlaneseq
      %v315 = vshrl.u32 %v314, 7
      %v316 = vsub.s32 0, %v315
      %v317 = vrot.slane %v311, %v316
      %v318 = vlaneseq
      %v319 = vshrl.u32 %v318, 7
      %v320 = vsub.s32 1, %v319
      %v321 = vrot.slane %v311, %v320
      %vm322 = vcmp.eq.s32.totalorder %v317, %v313
      %vm323 = vcmp.eq.s32.totalorder %v321, %v313
      %v325 = vlaneseq
      %v326 = vshrl.u32 %v325, 7
      %v327 = vsub.s32 0, %v326
      %v328 = vrot.slane %v310, %v327
      %v329 = vlaneseq
      %v330 = vshrl.u32 %v329, 7
      %v331 = vsub.s32 1, %v330
      %v332 = vrot.slane %v310, %v331
      %v335 = vsel %vm322, %v328, -1e+30
      %v336 = vsel %vm323, %v332, -1e+30
      %vm337 = vcmask 1043456
      %v338 = vsel %vm337, %v335, -inf
      %v339 = vsel %vm337, %v336, -inf
      %v340 = vmax.f32 %v338, %v339
      %341 = vmax.xlane.f32.xlu0 %v340
      %v342 = vpop.xlane.xlu0 %341
      %v343 = vsub.f32 %v335, %v342
      %v344 = vsub.f32 %v336, %v342
      %v345 = vmul.f32 %v343, 1.442695
      %v346 = vpow.pop %v345
      %v347 = vmul.f32 %v344, 1.442695
      %v348 = vpow.pop %v347
      %v349 = vsel %vm337, %v346, 0.0
      %v350 = vsel %vm337, %v348, 0.0
      %v351 = vadd.f32 %v349, %v350
      %352 = vadd.xlane.f32.xlu0 %v351
      %v353 = vpop.xlane.xlu0 %352
      %v354 = vrcp.pop %v353
      %v355 = vmul.f32 %v346, %v354
      %v356 = vmul.f32 %v348, %v354
      %v359 = vcombine.low %v355, %v356
      %361 = vst [vmem:[#allocation8] sm:$0xff] %v359
    $region33: #{tpu_custom_call.1} parent=1 // pred_fallthru
      _
    // Predicated region
    $region34: #{tpu_custom_call.1} parent=1 // pred_check
      _
    $region35: #{tpu_custom_call.1} parent=1 // pred_check_branch
      %363 = sbr.rel (0) target = $region37
    $region36: #{tpu_custom_call.1} parent=1 // pred_region
      %s365 = ssub.s32 128, 128
      %366 = vsyncadd [#allocation5], %s365
      %s368 = sshll.u32 [#allocation8], 4
      %s369 = int_to_ptr.vmem [resolvable:$true] %s368
      %371 = dma.vmem_to_hbm [thread:$0]  %s369, 128, %s4, [#allocation5]
    $region37: #{tpu_custom_call.1} parent=1 // pred_fallthru
      _
    // Predicated region
    $region38: #{tpu_custom_call.1} parent=1 // pred_check
      _
    $region39: #{tpu_custom_call.1} parent=1 // pred_check_branch
      %373 = sbr.rel (0) target = $region41
    $region40: #{tpu_custom_call.1} parent=1 // pred_region
      %374 = dma.done [#allocation5], 128
    $region41: #{tpu_custom_call.1} parent=1 // pred_fallthru
      _
    %375 = vsyncpa [#allocation4], 1
    %376 = vsyncpa [#allocation7], 1
    %377 = vsyncpa [#allocation5], 1

</llo_original>
